<compile_context>
chip_gen: v6e
topology: v6e:2x2x1
jax: 0.10.0
libtpu: 0.0.40
codegen_flags: <defaults>
</compile_context>

<pallas_src>
import functools

import jax
import jax.numpy as jnp
from jax.experimental import pallas as pl
from jax.experimental.pallas import tpu as pltpu

PAD_T = 2  # Conv2d padding=(2, 0): zero rows added before/after the sequence.


def _round_up(x, m):
    return ((x + m - 1) // m) * m


def _textcnn_kernel(ids_ref, embed_ref, wconv_ref, bconv_ref, moff_ref,
                    wfc_ref, bfc_ref, out_ref, xp_ref, *,
                    seq_len, f_min, f_max, t_pad, mxu_dtype):
    """Fused embed -> pad -> merged conv -> ReLU -> masked max -> FC.

      ids_ref   : (block_b*L, 1) int32 token ids (flattened batch tile)
      embed_ref : (V, D)         embedding table (VMEM resident)
      wconv_ref : (f_max*D, N)   merged, pre-transposed, zero-padded conv weight
      bconv_ref : (1, N)         merged conv bias (zero in padded channels)
      moff_ref  : (1, N)         per-channel mask offset = (filter_width - f_min)
      wfc_ref   : (N, C_pad)     pre-transposed, zero-padded FC weight
      bfc_ref   : (1, C_pad)     zero-padded FC bias
      out_ref   : (block_b, C_pad) logits (lane-dense store)
      xp_ref    : (block_b, t_pad+f_max-1, D) f32 scratch: zero-padded sequence
    """
    bt = out_ref.shape[0]
    vocab, d = embed_ref.shape
    n = wconv_ref.shape[1]

    # 1) Embedding lookup as a one-hot MXU matmul (exact: products are 0 or the
    #    table value, accumulated in f32).
    ids = ids_ref[...]                                               # (bt*L, 1)
    hot = ids == jax.lax.broadcasted_iota(jnp.int32, (bt * seq_len, vocab), 1)
    emb = jnp.dot(hot.astype(jnp.float32), embed_ref[...],
                  preferred_element_type=jnp.float32)                # (bt*L, d)

    # 2) Zero-padded sequence in VMEM scratch: 2 leading zeros (Conv2d padding)
    #    plus enough trailing zeros that every branch shares one window count and
    #    t_pad is a multiple of 8 (tile-aligned reshapes later).
    xp_ref[...] = jnp.zeros(xp_ref.shape, xp_ref.dtype)
    xp_ref[:, PAD_T:PAD_T + seq_len, :] = emb.reshape(bt, seq_len, d)

    # 3) im2col windows sliced off the scratch ref + ONE merged MXU matmul for all
    #    filter widths (bf16 operands, f32 accumulation).
    win = jnp.concatenate(
        [xp_ref[:, i:i + t_pad, :] for i in range(f_max)], axis=2)   # (bt,t_pad,f_max*d)
    win = win.reshape(bt * t_pad, f_max * d)
    acc = jnp.dot(win.astype(mxu_dtype), wconv_ref[...].astype(mxu_dtype),
                  preferred_element_type=jnp.float32)                # (bt*t_pad, n)
    acc = jnp.maximum(acc + bconv_ref[...], 0.0)                     # bias + ReLU (f32)
    acc = acc.reshape(bt, t_pad, n)

    # 4) Mask trailing window positions that are invalid for the narrower filters
    #    (0 is neutral for the post-ReLU max), then global max-over-time.
    vlen = (seq_len + 2 * PAD_T - f_min + 1) - moff_ref[...]         # (1, n)
    t_iota = jax.lax.broadcasted_iota(jnp.int32, (t_pad, n), 0)      # (t_pad, n)
    acc = jnp.where((t_iota < vlen)[None, :, :], acc, 0.0)
    pooled = jnp.max(acc, axis=1)                                    # (bt, n)

    # TODO(synk): dropout is identity here (eval-mode semantics).

    # 5) Lane-dense FC head.
    logits = jnp.dot(pooled.astype(mxu_dtype), wfc_ref[...].astype(mxu_dtype),
                     preferred_element_type=jnp.float32) + bfc_ref[...]
    out_ref[...] = logits.astype(out_ref.dtype)


def pack_textcnn_params(params, kernel_sizes, lane=128):
    """One-time param prep: merge/transpose/zero-pad weights into MXU-friendly,
    lane-dense layouts.  Column order matches torch.cat order (branch-major)."""
    kernel_sizes = tuple(kernel_sizes)
    f_min, f_max = min(kernel_sizes), max(kernel_sizes)
    embed = params["embed"].astype(jnp.float32)
    _, D = embed.shape
    K = params[f"conv{kernel_sizes[0]}_w"].shape[0]
    C = params["fc_w"].shape[0]
    n_feat = K * len(kernel_sizes)
    n_pad = _round_up(max(n_feat, lane), lane)
    c_pad = _round_up(max(C, lane), lane)

    w_conv = jnp.zeros((f_max * D, n_pad), jnp.float32)
    b_conv = jnp.zeros((1, n_pad), jnp.float32)
    moff = jnp.zeros((1, n_pad), jnp.int32)
    for idx, f in enumerate(kernel_sizes):
        w = params[f"conv{f}_w"].astype(jnp.float32)                 # (K, f, D)
        w = jnp.transpose(w, (1, 2, 0)).reshape(f * D, K)            # rows i*D+d, cols k
        lo = idx * K
        w_conv = w_conv.at[:f * D, lo:lo + K].set(w)
        b_conv = b_conv.at[0, lo:lo + K].set(params[f"conv{f}_b"].astype(jnp.float32))
        moff = moff.at[0, lo:lo + K].set(f - f_min)

    w_fc = jnp.zeros((n_pad, c_pad), jnp.float32)
    w_fc = w_fc.at[:n_feat, :C].set(params["fc_w"].astype(jnp.float32).T)
    b_fc = jnp.zeros((1, c_pad), jnp.float32)
    b_fc = b_fc.at[0, :C].set(params["fc_b"].astype(jnp.float32))

    return {"embed": embed, "w_conv": w_conv, "b_conv": b_conv, "moff": moff,
            "w_fc": w_fc, "b_fc": b_fc}


def textcnn_forward(tokens, packed, kernel_sizes, class_num, *,
                    block_b=8, mxu_dtype=jnp.bfloat16):
    """tokens: (B, L) int32 ids. Returns logits (B, class_num)."""
    kernel_sizes = tuple(kernel_sizes)
    f_min, f_max = min(kernel_sizes), max(kernel_sizes)
    B, L = tokens.shape
    V, D = packed["embed"].shape
    n_pad = packed["w_conv"].shape[1]
    c_pad = packed["w_fc"].shape[1]

    block_b = max(8, _round_up(block_b, 8))
    B_pad = _round_up(B, block_b)
    if B_pad != B:
        tokens = jnp.pad(tokens, ((0, B_pad - B), (0, 0)))           # pad with id 0
    ids = tokens.reshape(B_pad * L, 1)

    # Merged window count: longest branch (width f_min), rounded to a sublane multiple.
    t_pad = _round_up(L + 2 * PAD_T - f_min + 1, 8)
    l_xp = t_pad + f_max - 1                                         # padded seq length

    kern = functools.partial(_textcnn_kernel, seq_len=L, f_min=f_min, f_max=f_max,
                             t_pad=t_pad, mxu_dtype=mxu_dtype)
    block_rows = block_b * L
    grid = (B_pad // block_b,)

    out = pl.pallas_call(
        kern,
        out_shape=jax.ShapeDtypeStruct((B_pad, c_pad), jnp.float32),
        grid=grid,
        in_specs=[
            pl.BlockSpec((block_rows, 1), lambda b: (b, 0)),          # token ids
            pl.BlockSpec((V, D), lambda b: (0, 0)),                   # embed table
            pl.BlockSpec((f_max * D, n_pad), lambda b: (0, 0)),       # merged conv W
            pl.BlockSpec((1, n_pad), lambda b: (0, 0)),               # merged conv b
            pl.BlockSpec((1, n_pad), lambda b: (0, 0)),               # mask offsets
            pl.BlockSpec((n_pad, c_pad), lambda b: (0, 0)),           # FC W (padded)
            pl.BlockSpec((1, c_pad), lambda b: (0, 0)),               # FC b (padded)
        ],
        out_specs=pl.BlockSpec((block_b, c_pad), lambda b: (b, 0)),
        scratch_shapes=[pltpu.VMEM((block_b, l_xp, D), jnp.float32)],
        compiler_params=pltpu.CompilerParams(
            dimension_semantics=("parallel",)),
    )(ids, packed["embed"], packed["w_conv"], packed["b_conv"],
      packed["moff"], packed["w_fc"], packed["b_fc"])

    return out[:B, :class_num]


def _textcnn_reference(tokens, params, kernel_sizes):
    """Plain-JAX reference mirroring the PyTorch forward (eval mode)."""
    emb = jnp.take(params["embed"], tokens, axis=0)                  # (B, L, D)
    x_pad = jnp.pad(emb, ((0, 0), (PAD_T, PAD_T), (0, 0)))
    feats = []
    for f in kernel_sizes:
        w = params[f"conv{f}_w"]                                     # (K, f, D)
        b = params[f"conv{f}_b"]                                     # (K,)
        T = x_pad.shape[1] - f + 1
        windows = jnp.stack([x_pad[:, i:i + T, :] for i in range(f)], axis=2)
        conv = jnp.einsum("btfd,kfd->btk", windows, w) + b[None, None, :]
        feats.append(jnp.max(jnp.maximum(conv, 0.0), axis=1))
    feat = jnp.concatenate(feats, axis=1)                            # (B, 3K)
    return feat @ params["fc_w"].T + params["fc_b"][None, :]


if __name__ == "__main__":
    # Model hyper-parameters (small, consistent with TextCnn.__init__).
    embed_num, embed_dim = 100, 32
    class_num, kernel_num = 4, 8
    kernel_sizes = (3, 4, 5)
    B, L = 2, 8

    key = jax.random.PRNGKey(0)
    keys = jax.random.split(key, 10)
    params = {
        "embed": 0.1 * jax.random.normal(keys[0], (embed_num, embed_dim), jnp.float32),
        # PyTorch Linear layout: (out_features, in_features), (out_features,).
        "fc_w": 0.1 * jax.random.normal(
            keys[1], (class_num, kernel_num * len(kernel_sizes)), jnp.float32),
        "fc_b": 0.1 * jax.random.normal(keys[2], (class_num,), jnp.float32),
    }
    for i, f in enumerate(kernel_sizes):
        # Conv2d weight (K, 1, f, D) with the unit in-channel squeezed -> (K, f, D).
        params[f"conv{f}_w"] = 0.1 * jax.random.normal(
            keys[3 + i], (kernel_num, f, embed_dim), jnp.float32)
        params[f"conv{f}_b"] = 0.1 * jax.random.normal(
            keys[6 + i], (kernel_num,), jnp.float32)
    tokens = jax.random.randint(keys[9], (B, L), 0, embed_num, dtype=jnp.int32)

    packed = pack_textcnn_params(params, kernel_sizes)
    ref = _textcnn_reference(tokens, params, kernel_sizes)

    # f32 MXU path: structurally exact vs the plain-JAX reference.
    out_f32 = textcnn_forward(tokens, packed, kernel_sizes, class_num,
                              mxu_dtype=jnp.float32)
    jax.block_until_ready(out_f32)
    assert out_f32.shape == (B, class_num), out_f32.shape
    assert jnp.allclose(out_f32, ref, atol=2e-3, rtol=2e-3), (out_f32, ref)

    # Default fast path: bf16 MXU operands, f32 accumulation.
    out_bf16 = textcnn_forward(tokens, packed, kernel_sizes, class_num)
    jax.block_until_ready(out_bf16)
    assert out_bf16.shape == (B, class_num), out_bf16.shape
    assert jnp.allclose(out_bf16, ref, atol=5e-2, rtol=5e-2), (out_bf16, ref)

    print("KERNEL_OK")
</pallas_src>

<mosaic_0001>
module attributes {stable_mosaic.version = 11 : i64} {
  func.func @_textcnn_kernel(%arg0: i32, %arg1: memref<64x1xi32, #tpu.memory_space<vmem>>, %arg2: memref<100x32xf32, #tpu.memory_space<vmem>>, %arg3: memref<160x128xf32, #tpu.memory_space<vmem>>, %arg4: memref<1x128xf32, #tpu.memory_space<vmem>>, %arg5: memref<1x128xi32, #tpu.memory_space<vmem>>, %arg6: memref<128x128xf32, #tpu.memory_space<vmem>>, %arg7: memref<1x128xf32, #tpu.memory_space<vmem>>, %arg8: memref<8x128xf32, #tpu.memory_space<vmem>>, %arg9: memref<8x20x32xf32, #tpu.memory_space<vmem>>) attributes {dimension_semantics = [#tpu.dimension_semantics<parallel>], iteration_bounds = array<i64: 1>, scalar_prefetch = 0 : i64, scratch_operands = 1 : i64, tpu.core_type = #tpu.core_type<tc>, window_params = [{transform_indices = @transform_0, window_bounds = array<i64: 64, 1>}, {pipeline_mode = #tpu.pipeline_mode<synchronous>, transform_indices = @transform_1, window_bounds = array<i64: 100, 32>}, {pipeline_mode = #tpu.pipeline_mode<synchronous>, transform_indices = @transform_2, window_bounds = array<i64: 160, 128>}, {pipeline_mode = #tpu.pipeline_mode<synchronous>, transform_indices = @transform_3, window_bounds = array<i64: 1, 128>}, {pipeline_mode = #tpu.pipeline_mode<synchronous>, transform_indices = @transform_4, window_bounds = array<i64: 1, 128>}, {pipeline_mode = #tpu.pipeline_mode<synchronous>, transform_indices = @transform_5, window_bounds = array<i64: 128, 128>}, {pipeline_mode = #tpu.pipeline_mode<synchronous>, transform_indices = @transform_6, window_bounds = array<i64: 1, 128>}, {transform_indices = @transform_7, window_bounds = array<i64: 8, 128>}]} {
    %c0 = arith.constant 0 : index
    %c0_0 = arith.constant 0 : index
    %0 = vector.load %arg1[%c0, %c0_0] : memref<64x1xi32, #tpu.memory_space<vmem>>, vector<64x1xi32>
    %1 = tpu.iota {dimensions = array<i32: 1>} : vector<64x100xi32>
    %2 = vector.broadcast %0 : vector<64x1xi32> to vector<64x100xi32>
    %3 = arith.cmpi eq, %2, %1 : vector<64x100xi32>
    %4 = arith.extui %3 : vector<64x100xi1> to vector<64x100xi32>
    %5 = arith.sitofp %4 : vector<64x100xi32> to vector<64x100xf32>
    %c0_1 = arith.constant 0 : index
    %c0_2 = arith.constant 0 : index
    %6 = vector.load %arg2[%c0_1, %c0_2] : memref<100x32xf32, #tpu.memory_space<vmem>>, vector<100x32xf32>
    %cst = arith.constant dense<0.000000e+00> : vector<64x32xf32>
    %7 = tpu.matmul %5, %6, %cst {dimension_numbers = #tpu.dot_dimension_numbers<[1], [0], [0], [1], [0, 0, 1, 1], [], []>} : vector<64x100xf32>, vector<100x32xf32>, vector<64x32xf32> -> vector<64x32xf32>
    %cst_3 = arith.constant 0.000000e+00 : f32
    %8 = vector.broadcast %cst_3 : f32 to vector<8x20x32xf32>
    %c0_4 = arith.constant 0 : index
    %c0_5 = arith.constant 0 : index
    %c0_6 = arith.constant 0 : index
    %9 = vector.load %arg9[%c0_4, %c0_5, %c0_6] : memref<8x20x32xf32, #tpu.memory_space<vmem>>, vector<8x20x32xf32>
    tpu.vector_store %arg9[%c0_4, %c0_5, %c0_6], %8 {strides = array<i32>} : memref<8x20x32xf32, #tpu.memory_space<vmem>>, vector<8x20x32xf32>,
    %10 = vector.shape_cast %7 : vector<64x32xf32> to vector<8x8x32xf32>
    %c0_7 = arith.constant 0 : index
    %c2 = arith.constant 2 : index
    %c0_8 = arith.constant 0 : index
    %11 = vector.load %arg9[%c0_7, %c2, %c0_8] : memref<8x20x32xf32, #tpu.memory_space<vmem>>, vector<8x8x32xf32>
    tpu.vector_store %arg9[%c0_7, %c2, %c0_8], %10 {strides = array<i32>} : memref<8x20x32xf32, #tpu.memory_space<vmem>>, vector<8x8x32xf32>,
    %c0_9 = arith.constant 0 : index
    %c0_10 = arith.constant 0 : index
    %c0_11 = arith.constant 0 : index
    %12 = vector.load %arg9[%c0_9, %c0_10, %c0_11] : memref<8x20x32xf32, #tpu.memory_space<vmem>>, vector<8x16x32xf32>
    %c0_12 = arith.constant 0 : index
    %c1 = arith.constant 1 : index
    %c0_13 = arith.constant 0 : index
    %13 = vector.load %arg9[%c0_12, %c1, %c0_13] : memref<8x20x32xf32, #tpu.memory_space<vmem>>, vector<8x16x32xf32>
    %c0_14 = arith.constant 0 : index
    %c2_15 = arith.constant 2 : index
    %c0_16 = arith.constant 0 : index
    %14 = vector.load %arg9[%c0_14, %c2_15, %c0_16] : memref<8x20x32xf32, #tpu.memory_space<vmem>>, vector<8x16x32xf32>
    %c0_17 = arith.constant 0 : index
    %c3 = arith.constant 3 : index
    %c0_18 = arith.constant 0 : index
    %15 = vector.load %arg9[%c0_17, %c3, %c0_18] : memref<8x20x32xf32, #tpu.memory_space<vmem>>, vector<8x16x32xf32>
    %c0_19 = arith.constant 0 : index
    %c4 = arith.constant 4 : index
    %c0_20 = arith.constant 0 : index
    %16 = vector.load %arg9[%c0_19, %c4, %c0_20] : memref<8x20x32xf32, #tpu.memory_space<vmem>>, vector<8x16x32xf32>
    %17 = tpu.concatenate %12, %13, %14, %15, %16 in 2 : vector<8x16x32xf32>, vector<8x16x32xf32>, vector<8x16x32xf32>, vector<8x16x32xf32>, vector<8x16x32xf32> -> vector<8x16x160xf32>
    %18 = vector.shape_cast %17 : vector<8x16x160xf32> to vector<128x160xf32>
    %c0_21 = arith.constant 0 : index
    %c0_22 = arith.constant 0 : index
    %19 = vector.load %arg3[%c0_21, %c0_22] : memref<160x128xf32, #tpu.memory_space<vmem>>, vector<160x128xf32>
    %cst_23 = arith.constant dense<0.000000e+00> : vector<128x128xf32>
    %20 = tpu.matmul %18, %19, %cst_23 {dimension_numbers = #tpu.dot_dimension_numbers<[1], [0], [0], [1], [0, 0, 1, 1], [], []>} : vector<128x160xf32>, vector<160x128xf32>, vector<128x128xf32> -> vector<128x128xf32>
    %c0_24 = arith.constant 0 : index
    %c0_25 = arith.constant 0 : index
    %21 = vector.load %arg4[%c0_24, %c0_25] : memref<1x128xf32, #tpu.memory_space<vmem>>, vector<1x128xf32>
    %22 = vector.broadcast %21 : vector<1x128xf32> to vector<128x128xf32>
    %23 = arith.addf %20, %22 : vector<128x128xf32>
    %cst_26 = arith.constant 0.000000e+00 : f32
    %24 = vector.broadcast %cst_26 : f32 to vector<128x128xf32>
    %25 = arith.maximumf %23, %24 : vector<128x128xf32>
    %26 = vector.shape_cast %25 : vector<128x128xf32> to vector<8x16x128xf32>
    %c0_27 = arith.constant 0 : index
    %c0_28 = arith.constant 0 : index
    %27 = vector.load %arg5[%c0_27, %c0_28] : memref<1x128xi32, #tpu.memory_space<vmem>>, vector<1x128xi32>
    %c10_i32 = arith.constant 10 : i32
    %28 = vector.broadcast %c10_i32 : i32 to vector<1x128xi32>
    %29 = arith.subi %28, %27 : vector<1x128xi32>
    %30 = tpu.iota {dimensions = array<i32: 0>} : vector<16x128xi32>
    %31 = vector.broadcast %29 : vector<1x128xi32> to vector<16x128xi32>
    %32 = arith.cmpi slt, %30, %31 : vector<16x128xi32>
    %33 = vector.shape_cast %32 : vector<16x128xi1> to vector<1x16x128xi1>
    %cst_29 = arith.constant 0.000000e+00 : f32
    %34 = vector.shape_cast %33 : vector<1x16x128xi1> to vector<1x16x128xi1>
    %35 = vector.broadcast %34 : vector<1x16x128xi1> to vector<8x16x128xi1>
    %36 = vector.broadcast %cst_29 : f32 to vector<8x16x128xf32>
    %37 = arith.select %35, %26, %36 : vector<8x16x128xi1>, vector<8x16x128xf32>
    %cst_30 = arith.constant dense<0xFF800000> : vector<8x128xf32>
    %38 = vector.multi_reduction <maximumf>, %37, %cst_30 [1] : vector<8x16x128xf32> to vector<8x128xf32>
    %c0_31 = arith.constant 0 : index
    %c0_32 = arith.constant 0 : index
    %39 = vector.load %arg6[%c0_31, %c0_32] : memref<128x128xf32, #tpu.memory_space<vmem>>, vector<128x128xf32>
    %cst_33 = arith.constant dense<0.000000e+00> : vector<8x128xf32>
    %40 = tpu.matmul %38, %39, %cst_33 {dimension_numbers = #tpu.dot_dimension_numbers<[1], [0], [0], [1], [0, 0, 1, 1], [], []>} : vector<8x128xf32>, vector<128x128xf32>, vector<8x128xf32> -> vector<8x128xf32>
    %c0_34 = arith.constant 0 : index
    %c0_35 = arith.constant 0 : index
    %41 = vector.load %arg7[%c0_34, %c0_35] : memref<1x128xf32, #tpu.memory_space<vmem>>, vector<1x128xf32>
    %42 = vector.broadcast %41 : vector<1x128xf32> to vector<8x128xf32>
    %43 = arith.addf %40, %42 : vector<8x128xf32>
    %c0_36 = arith.constant 0 : index
    %c0_37 = arith.constant 0 : index
    %44 = vector.load %arg8[%c0_36, %c0_37] : memref<8x128xf32, #tpu.memory_space<vmem>>, vector<8x128xf32>
    tpu.vector_store %arg8[%c0_36, %c0_37], %43 {strides = array<i32>} : memref<8x128xf32, #tpu.memory_space<vmem>>, vector<8x128xf32>,
    return
  }
  func.func @transform_0(%arg0: i32) -> (i32, i32) {
    %c0_i32 = arith.constant 0 : i32
    %c0_i32_0 = arith.constant 0 : i32
    return %arg0, %c0_i32 : i32, i32
  }
  func.func @transform_1(%arg0: i32) -> (i32, i32) {
    %c0_i32 = arith.constant 0 : i32
    %c0_i32_0 = arith.constant 0 : i32
    %c0_i32_1 = arith.constant 0 : i32
    return %c0_i32, %c0_i32_0 : i32, i32
  }
  func.func @transform_2(%arg0: i32) -> (i32, i32) {
    %c0_i32 = arith.constant 0 : i32
    %c0_i32_0 = arith.constant 0 : i32
    %c0_i32_1 = arith.constant 0 : i32
    return %c0_i32, %c0_i32_0 : i32, i32
  }
  func.func @transform_3(%arg0: i32) -> (i32, i32) {
    %c0_i32 = arith.constant 0 : i32
    %c0_i32_0 = arith.constant 0 : i32
    %c0_i32_1 = arith.constant 0 : i32
    return %c0_i32, %c0_i32_0 : i32, i32
  }
  func.func @transform_4(%arg0: i32) -> (i32, i32) {
    %c0_i32 = arith.constant 0 : i32
    %c0_i32_0 = arith.constant 0 : i32
    %c0_i32_1 = arith.constant 0 : i32
    return %c0_i32, %c0_i32_0 : i32, i32
  }
  func.func @transform_5(%arg0: i32) -> (i32, i32) {
    %c0_i32 = arith.constant 0 : i32
    %c0_i32_0 = arith.constant 0 : i32
    %c0_i32_1 = arith.constant 0 : i32
    return %c0_i32, %c0_i32_0 : i32, i32
  }
  func.func @transform_6(%arg0: i32) -> (i32, i32) {
    %c0_i32 = arith.constant 0 : i32
    %c0_i32_0 = arith.constant 0 : i32
    %c0_i32_1 = arith.constant 0 : i32
    return %c0_i32, %c0_i32_0 : i32, i32
  }
  func.func @transform_7(%arg0: i32) -> (i32, i32) {
    %c0_i32 = arith.constant 0 : i32
    %c0_i32_0 = arith.constant 0 : i32
    return %arg0, %c0_i32 : i32, i32
  }
}

</mosaic_0001>

<llo_original>
// kernel: tpu_custom_call.1
$region0: #{tpu_custom_call.1}
  #allocation0 [shape = 'u32[]', space=smem, size = 0x4, offset = 0x4, fixed_abs, tag = 'smem constant byte address 0x4 - core index']
  #allocation1 [shape = 'u32[144,128]{1,0:T(1,128)}', space=vmem, size = 0x12000, scoped, tag = 'internal scratch']
  #allocation2 [shape = 'f32[8,20,32]{2,1,0:T(8,128)}', space=vmem, size = 0x18000, scoped, tag = 'scratch operand']
  %s0 = inlined_call_operand.vmem [shape: s32[64,1], index: 0, kind: input, shape index: {}]
  %s1 = inlined_call_operand.vmem [shape: f32[100,32], index: 1, kind: input, shape index: {}]
  %s2 = inlined_call_operand.vmem [shape: f32[160,128], index: 2, kind: input, shape index: {}]
  %s3 = inlined_call_operand.vmem [shape: f32[1,128], index: 3, kind: input, shape index: {}]
  %s4 = inlined_call_operand.vmem [shape: s32[1,128], index: 4, kind: input, shape index: {}]
  %s5 = inlined_call_operand.hbm [shape: f32[128,128], index: 5, kind: input, shape index: {}]
  %s6 = inlined_call_operand.vmem [shape: f32[1,128], index: 6, kind: input, shape index: {}]
  %s7 = inlined_call_operand.hbm [shape: f32[8,128], index: 7, kind: output, shape index: {}]
  %s8 = sld [smem:[#allocation0]]
  $region42: #{tpu_custom_call.1} parent=0
    _
  %s10 = ssub.s32 1, %s8
  %s11 = scalar_select 0, %s10, %s8
  $region1: #{tpu_custom_call.1} parent=0
    #allocation3 [shape = 'u8[65536]{0}', space=vmem, size = 0x10000, scoped, tag = 'input window, operand 5, single buffered']
    #allocation4 [shape = 's32[1]{0}', space=sflag, size = 0x4, scoped, tag = 'scoped memory for tpu_custom_call.1']
    #allocation5 [shape = 's32[1]{0}', space=sflag, size = 0x4, scoped, tag = 'scoped memory for tpu_custom_call.1']
    #allocation6 [shape = 'u8[4096]{0}', space=vmem, size = 0x1000, scoped, tag = 'output window, operand 0, single buffered']
    %12 = vsyncpa [#allocation4], 0
    %13 = vsyncpa [#allocation5], 0
    // Predicated region
    $region2: #{tpu_custom_call.1} parent=1 // pred_check
      _
    $region3: #{tpu_custom_call.1} parent=1 // pred_check_branch
      %15 = sbr.rel (0) target = $region5
    $region4: #{tpu_custom_call.1} parent=1 // pred_region
      _
    $region5: #{tpu_custom_call.1} parent=1 // pred_fallthru
      _
    // Predicated region
    $region6: #{tpu_custom_call.1} parent=1 // pred_check
      _
    $region7: #{tpu_custom_call.1} parent=1 // pred_check_branch
      %17 = sbr.rel (0) target = $region9
    $region8: #{tpu_custom_call.1} parent=1 // pred_region
      _
    $region9: #{tpu_custom_call.1} parent=1 // pred_fallthru
      _
    // Predicated region
    $region10: #{tpu_custom_call.1} parent=1 // pred_check
      _
    $region11: #{tpu_custom_call.1} parent=1 // pred_check_branch
      %19 = sbr.rel (0) target = $region13
    $region12: #{tpu_custom_call.1} parent=1 // pred_region
      _
    $region13: #{tpu_custom_call.1} parent=1 // pred_fallthru
      _
    // Predicated region
    $region14: #{tpu_custom_call.1} parent=1 // pred_check
      _
    $region15: #{tpu_custom_call.1} parent=1 // pred_check_branch
      %21 = sbr.rel (0) target = $region17
    $region16: #{tpu_custom_call.1} parent=1 // pred_region
      _
    $region17: #{tpu_custom_call.1} parent=1 // pred_fallthru
      _
    // Predicated region
    $region18: #{tpu_custom_call.1} parent=1 // pred_check
      _
    $region19: #{tpu_custom_call.1} parent=1 // pred_check_branch
      %23 = sbr.rel (0) target = $region21
    $region20: #{tpu_custom_call.1} parent=1 // pred_region
      _
    $region21: #{tpu_custom_call.1} parent=1 // pred_fallthru
      _
    // Predicated region
    $region22: #{tpu_custom_call.1} parent=1 // pred_check
      _
    $region23: #{tpu_custom_call.1} parent=1 // pred_check_branch
      %25 = sbr.rel (0) target = $region25
    $region24: #{tpu_custom_call.1} parent=1 // pred_region
      %s27 = ssub.s32 2048, 2048
      %28 = vsyncadd [#allocation4], %s27
      %s29 = sshll.u32 [#allocation3], 4
      %s30 = int_to_ptr.vmem [resolvable:$true] %s29
      %35 = dma.hbm_to_vmem [thread:$0]  %s5, 2048, %s30, [#allocation4], 128, 128, 8
    $region25: #{tpu_custom_call.1} parent=1 // pred_fallthru
      _
    // Predicated region
    $region26: #{tpu_custom_call.1} parent=1 // pred_check
      _
    $region27: #{tpu_custom_call.1} parent=1 // pred_check_branch
      %37 = sbr.rel (0) target = $region29
    $region28: #{tpu_custom_call.1} parent=1 // pred_region
      _
    $region29: #{tpu_custom_call.1} parent=1 // pred_fallthru
      _
    // Predicated region
    $region30: #{tpu_custom_call.1} parent=1 // pred_check
      _
    $region31: #{tpu_custom_call.1} parent=1 // pred_check_branch
      %39 = sbr.rel (0) target = $region33
    $region32: #{tpu_custom_call.1} parent=1 // pred_region
      %40 = dma.done [#allocation4], 2048
    $region33: #{tpu_custom_call.1} parent=1 // pred_fallthru
      _
    %v41 = vld [vmem:[%s0] sm:$0xff]
    %v42 = vld [vmem:[%s0 + $0x8] sm:$0xff]
    %v43 = vld [vmem:[%s0 + $0x10] sm:$0xff]
    %v44 = vld [vmem:[%s0 + $0x18] sm:$0xff]
    %v45 = vld [vmem:[%s0 + $0x20] sm:$0xff]
    %v46 = vld [vmem:[%s0 + $0x28] sm:$0xff]
    %v47 = vld [vmem:[%s0 + $0x30] sm:$0xff]
    %v48 = vld [vmem:[%s0 + $0x38] sm:$0xff]
    %v49 = vlaneseq
    %v50 = vand.u32 %v49, 127
    %51 = vset.pattern.permute.xlu0 0
    %52 = vperm.xlu0 %51, %v41
    %v53 = vpop.permute.xlu0 %52
    %54 = vset.pattern.permute.xlu0 0
    %55 = vperm.xlu0 %54, %v42
    %v56 = vpop.permute.xlu0 %55
    %57 = vset.pattern.permute.xlu0 0
    %58 = vperm.xlu0 %57, %v43
    %v59 = vpop.permute.xlu0 %58
    %60 = vset.pattern.permute.xlu0 0
    %61 = vperm.xlu0 %60, %v44
    %v62 = vpop.permute.xlu0 %61
    %63 = vset.pattern.permute.xlu0 0
    %64 = vperm.xlu0 %63, %v45
    %v65 = vpop.permute.xlu0 %64
    %66 = vset.pattern.permute.xlu0 0
    %67 = vperm.xlu0 %66, %v46
    %v68 = vpop.permute.xlu0 %67
    %69 = vset.pattern.permute.xlu0 0
    %70 = vperm.xlu0 %69, %v47
    %v71 = vpop.permute.xlu0 %70
    %72 = vset.pattern.permute.xlu0 0
    %73 = vperm.xlu0 %72, %v48
    %v74 = vpop.permute.xlu0 %73
    %vm75 = vcmp.eq.s32.totalorder %v53, %v50
    %vm76 = vcmp.eq.s32.totalorder %v56, %v50
    %vm77 = vcmp.eq.s32.totalorder %v59, %v50
    %vm78 = vcmp.eq.s32.totalorder %v62, %v50
    %vm79 = vcmp.eq.s32.totalorder %v65, %v50
    %vm80 = vcmp.eq.s32.totalorder %v68, %v50
    %vm81 = vcmp.eq.s32.totalorder %v71, %v50
    %vm82 = vcmp.eq.s32.totalorder %v74, %v50
    %v83 = vsel %vm75, 1, 0
    %v84 = vsel %vm76, 1, 0
    %v85 = vsel %vm77, 1, 0
    %v86 = vsel %vm78, 1, 0
    %v87 = vsel %vm79, 1, 0
    %v88 = vsel %vm80, 1, 0
    %v89 = vsel %vm81, 1, 0
    %v90 = vsel %vm82, 1, 0
    %v91 = vcvt.s32.f32 %v83
    %v92 = vcvt.s32.f32 %v84
    %v93 = vcvt.s32.f32 %v85
    %v94 = vcvt.s32.f32 %v86
    %v95 = vcvt.s32.f32 %v87
    %v96 = vcvt.s32.f32 %v88
    %v97 = vcvt.s32.f32 %v89
    %v98 = vcvt.s32.f32 %v90
    %v99 = vld [vmem:[%s1] sm:$0xff]
    %v100 = vld [vmem:[%s1 + $0x8] sm:$0xff]
    %v101 = vld [vmem:[%s1 + $0x10] sm:$0xff]
    %v102 = vld [vmem:[%s1 + $0x18] sm:$0xff]
    %v103 = vld [vmem:[%s1 + $0x20] sm:$0xff]
    %v104 = vld [vmem:[%s1 + $0x28] sm:$0xff]
    %v105 = vld [vmem:[%s1 + $0x30] sm:$0xff]
    %v106 = vld [vmem:[%s1 + $0x38] sm:$0xff]
    %v107 = vld [vmem:[%s1 + $0x40] sm:$0xff]
    %v108 = vld [vmem:[%s1 + $0x48] sm:$0xff]
    %v109 = vld [vmem:[%s1 + $0x50] sm:$0xff]
    %v110 = vld [vmem:[%s1 + $0x58] sm:$0xff]
    %v111 = vld [vmem:[%s1 + $0x60] sm:$0xf]
    %vm112 = vcmask 818176
    %v114 = vsel %vm112, %v91, 0
    %v117 = vsel %vm112, %v92, 0
    %v120 = vsel %vm112, %v93, 0
    %v123 = vsel %vm112, %v94, 0
    %v126 = vsel %vm112, %v95, 0
    %v129 = vsel %vm112, %v96, 0
    %v132 = vsel %vm112, %v97, 0
    %v135 = vsel %vm112, %v98, 0
    %vm137 = vcmask 1043456
    %v139 = vsel %vm137, %v111, 0
    %141 = vmatprep.subr.mxu0 0.0
    %142 = vmatpush1.msra.mxu0 0.0
    %143 = vmatprep.subr.mxu0 0.0
    %144 = vmatpush1.msra.mxu0 0.0
    %145 = vmatprep.subr.mxu0 0.0
    %146 = vmatpush1.msra.mxu0 0.0
    %147 = vmatprep.subr.mxu0 0.0
    %148 = vmatpush1.msra.mxu0 %v139
    %149 = vmatprep.subr.mxu0 0.0
    %150 = vmatpush1.msra.mxu0 %v110
    %151 = vmatprep.subr.mxu0 0.0
    %152 = vmatpush1.msra.mxu0 %v109
    %153 = vmatprep.subr.mxu0 0.0
    %154 = vmatpush1.msra.mxu0 %v108
    %155 = vmatprep.subr.mxu0 0.0
    %156 = vmatpush1.msra.mxu0 %v107
    %157 = vmatprep.subr.mxu0 0.0
    %158 = vmatpush1.msra.mxu0 %v106
    %159 = vmatprep.subr.mxu0 0.0
    %160 = vmatpush1.msra.mxu0 %v105
    %161 = vmatprep.subr.mxu0 0.0
    %162 = vmatpush1.msra.mxu0 %v104
    %163 = vmatprep.subr.mxu0 0.0
    %164 = vmatpush1.msra.mxu0 %v103
    %165 = vmatprep.subr.mxu0 0.0
    %166 = vmatpush1.msra.mxu0 %v102
    %167 = vmatprep.subr.mxu0 0.0
    %168 = vmatpush1.msra.mxu0 %v101
    %169 = vmatprep.subr.mxu0 0.0
    %170 = vmatpush1.msra.mxu0 %v100
    %171 = vmatprep.subr.mxu0 0.0
    %172 = vmatpush1.msra.mxu0 %v99
    %173 = vmatprep.subr.mxu0 0.0
    %174 = vmatpush2.msra.mxu0 0.0
    %175 = vmatprep.subr.mxu0 0.0
    %176 = vmatpush2.msra.mxu0 0.0
    %177 = vmatprep.subr.mxu0 0.0
    %178 = vmatpush2.msra.mxu0 0.0
    %179 = vmatprep.subr.mxu0 0.0
    %180 = vmatpush2.msra.mxu0 0.0
    %181 = vmatprep.subr.mxu0 0.0
    %182 = vmatpush2.msra.mxu0 0.0
    %183 = vmatprep.subr.mxu0 0.0
    %184 = vmatpush2.msra.mxu0 0.0
    %185 = vmatprep.subr.mxu0 0.0
    %186 = vmatpush2.msra.mxu0 0.0
    %187 = vmatprep.subr.mxu0 0.0
    %188 = vmatpush2.msra.mxu0 0.0
    %189 = vmatprep.subr.mxu0 0.0
    %190 = vmatpush2.msra.mxu0 0.0
    %191 = vmatprep.subr.mxu0 0.0
    %192 = vmatpush2.msra.mxu0 0.0
    %193 = vmatprep.subr.mxu0 0.0
    %194 = vmatpush2.msra.mxu0 0.0
    %195 = vmatprep.subr.mxu0 0.0
    %196 = vmatpush2.msra.mxu0 0.0
    %197 = vmatprep.subr.mxu0 0.0
    %198 = vmatpush2.msra.mxu0 0.0
    %199 = vmatprep.subr.mxu0 0.0
    %200 = vmatpush2.msra.mxu0 0.0
    %201 = vmatprep.subr.mxu0 0.0
    %202 = vmatpush2.msra.mxu0 0.0
    %203 = vmatprep.subr.mxu0 0.0
    %204 = vmatpush2.msra.mxu0 0.0
    %205 = vmatprep.mubr.f32.mxu0 0.0
    %206 = vmatmul.mubr.f32.gmra.mxu0 %v114
    %v207 = vpop.f32.mrf.mxu0
    %v208 = vadd.f32 0.0, %v207
    %v209 = vpop.f32.mrf.mxu0
    %210 = vmatprep.mubr.f32.mxu0 0.0
    %211 = vmatmul.mubr.f32.gmra.mxu0 %v117
    %v212 = vpop.f32.mrf.mxu0
    %v213 = vadd.f32 0.0, %v212
    %v214 = vpop.f32.mrf.mxu0
    %215 = vmatprep.mubr.f32.mxu0 0.0
    %216 = vmatmul.mubr.f32.gmra.mxu0 %v120
    %v217 = vpop.f32.mrf.mxu0
    %v218 = vadd.f32 0.0, %v217
    %v219 = vpop.f32.mrf.mxu0
    %220 = vmatprep.mubr.f32.mxu0 0.0
    %221 = vmatmul.mubr.f32.gmra.mxu0 %v123
    %v222 = vpop.f32.mrf.mxu0
    %v223 = vadd.f32 0.0, %v222
    %v224 = vpop.f32.mrf.mxu0
    %225 = vmatprep.mubr.f32.mxu0 0.0
    %226 = vmatmul.mubr.f32.gmra.mxu0 %v126
    %v227 = vpop.f32.mrf.mxu0
    %v228 = vadd.f32 0.0, %v227
    %v229 = vpop.f32.mrf.mxu0
    %230 = vmatprep.mubr.f32.mxu0 0.0
    %231 = vmatmul.mubr.f32.gmra.mxu0 %v129
    %v232 = vpop.f32.mrf.mxu0
    %v233 = vadd.f32 0.0, %v232
    %v234 = vpop.f32.mrf.mxu0
    %235 = vmatprep.mubr.f32.mxu0 0.0
    %236 = vmatmul.mubr.f32.gmra.mxu0 %v132
    %v237 = vpop.f32.mrf.mxu0
    %v238 = vadd.f32 0.0, %v237
    %v239 = vpop.f32.mrf.mxu0
    %240 = vmatprep.mubr.f32.mxu0 0.0
    %241 = vmatmul.mubr.f32.gmra.mxu0 %v135
    %v242 = vpop.f32.mrf.mxu0
    %v243 = vadd.f32 0.0, %v242
    %v244 = vpop.f32.mrf.mxu0
    %245 = vdwg.mxu0
    %vm246 = vcmask 261120
    %247 = vst.msk [vmem:[#allocation2] sm:$0xff] %vm246, 0.0
    %248 = vst.msk [vmem:[#allocation2 + $0x8] sm:$0xff] %vm246, 0.0
    %vm249 = vcmask 257024
    %250 = vst.msk [vmem:[#allocation2 + $0x10] sm:$0xf] %vm249, 0.0
    %251 = vst.msk [vmem:[#allocation2 + $0x18] sm:$0xff] %vm246, 0.0
    %252 = vst.msk [vmem:[#allocation2 + $0x20] sm:$0xff] %vm246, 0.0
    %253 = vst.msk [vmem:[#allocation2 + $0x28] sm:$0xf] %vm249, 0.0
    %254 = vst.msk [vmem:[#allocation2 + $0x30] sm:$0xff] %vm246, 0.0
    %255 = vst.msk [vmem:[#allocation2 + $0x38] sm:$0xff] %vm246, 0.0
    %256 = vst.msk [vmem:[#allocation2 + $0x40] sm:$0xf] %vm249, 0.0
    %257 = vst.msk [vmem:[#allocation2 + $0x48] sm:$0xff] %vm246, 0.0
    %258 = vst.msk [vmem:[#allocation2 + $0x50] sm:$0xff] %vm246, 0.0
    %259 = vst.msk [vmem:[#allocation2 + $0x58] sm:$0xf] %vm249, 0.0
    %260 = vst.msk [vmem:[#allocation2 + $0x60] sm:$0xff] %vm246, 0.0
    %261 = vst.msk [vmem:[#allocation2 + $0x68] sm:$0xff] %vm246, 0.0
    %262 = vst.msk [vmem:[#allocation2 + $0x70] sm:$0xf] %vm249, 0.0
    %263 = vst.msk [vmem:[#allocation2 + $0x78] sm:$0xff] %vm246, 0.0
    %264 = vst.msk [vmem:[#allocation2 + $0x80] sm:$0xff] %vm246, 0.0
    %265 = vst.msk [vmem:[#allocation2 + $0x88] sm:$0xf] %vm249, 0.0
    %266 = vst.msk [vmem:[#allocation2 + $0x90] sm:$0xff] %vm246, 0.0
    %267 = vst.msk [vmem:[#allocation2 + $0x98] sm:$0xff] %vm246, 0.0
    %268 = vst.msk [vmem:[#allocation2 + $0xa0] sm:$0xf] %vm249, 0.0
    %269 = vst.msk [vmem:[#allocation2 + $0xa8] sm:$0xff] %vm246, 0.0
    %270 = vst.msk [vmem:[#allocation2 + $0xb0] sm:$0xff] %vm246, 0.0
    %271 = vst.msk [vmem:[#allocation2 + $0xb8] sm:$0xf] %vm249, 0.0
    %272 = vst.msk [vmem:[#allocation2 + $0x2] sm:$0xff] %vm246, %v208
    %273 = vst.msk [vmem:[#allocation2 + $0x1a] sm:$0xff] %vm246, %v213
    %274 = vst.msk [vmem:[#allocation2 + $0x32] sm:$0xff] %vm246, %v218
    %275 = vst.msk [vmem:[#allocation2 + $0x4a] sm:$0xff] %vm246, %v223
    %276 = vst.msk [vmem:[#allocation2 + $0x62] sm:$0xff] %vm246, %v228
    %277 = vst.msk [vmem:[#allocation2 + $0x7a] sm:$0xff] %vm246, %v233
    %278 = vst.msk [vmem:[#allocation2 + $0x92] sm:$0xff] %vm246, %v238
    %279 = vst.msk [vmem:[#allocation2 + $0xaa] sm:$0xff] %vm246, %v243
    %v280 = vld [vmem:[#allocation2] sm:$0xff]
    %v281 = vld [vmem:[#allocation2 + $0x8] sm:$0xff]
    %v282 = vld [vmem:[#allocation2 + $0x18] sm:$0xff]
    %v283 = vld [vmem:[#allocation2 + $0x20] sm:$0xff]
    %v284 = vld [vmem:[#allocation2 + $0x30] sm:$0xff]
    %v285 = vld [vmem:[#allocation2 + $0x38] sm:$0xff]
    %v286 = vld [vmem:[#allocation2 + $0x48] sm:$0xff]
    %v287 = vld [vmem:[#allocation2 + $0x50] sm:$0xff]
    %v288 = vld [vmem:[#allocation2 + $0x60] sm:$0xff]
    %v289 = vld [vmem:[#allocation2 + $0x68] sm:$0xff]
    %v290 = vld [vmem:[#allocation2 + $0x78] sm:$0xff]
    %v291 = vld [vmem:[#allocation2 + $0x80] sm:$0xff]
    %v292 = vld [vmem:[#allocation2 + $0x90] sm:$0xff]
    %v293 = vld [vmem:[#allocation2 + $0x98] sm:$0xff]
    %v294 = vld [vmem:[#allocation2 + $0xa8] sm:$0xff]
    %v295 = vld [vmem:[#allocation2 + $0xb0] sm:$0xff]
    %v296 = vld [vmem:[#allocation2 + $0x1] sm:$0xff]
    %v297 = vld [vmem:[#allocation2 + $0x9] sm:$0xff]
    %v298 = vld [vmem:[#allocation2 + $0x19] sm:$0xff]
    %v299 = vld [vmem:[#allocation2 + $0x21] sm:$0xff]
    %v300 = vld [vmem:[#allocation2 + $0x31] sm:$0xff]
    %v301 = vld [vmem:[#allocation2 + $0x39] sm:$0xff]
    %v302 = vld [vmem:[#allocation2 + $0x49] sm:$0xff]
    %v303 = vld [vmem:[#allocation2 + $0x51] sm:$0xff]
    %v304 = vld [vmem:[#allocation2 + $0x61] sm:$0xff]
    %v305 = vld [vmem:[#allocation2 + $0x69] sm:$0xff]
    %v306 = vld [vmem:[#allocation2 + $0x79] sm:$0xff]
    %v307 = vld [vmem:[#allocation2 + $0x81] sm:$0xff]
    %v308 = vld [vmem:[#allocation2 + $0x91] sm:$0xff]
    %v309 = vld [vmem:[#allocation2 + $0x99] sm:$0xff]
    %v310 = vld [vmem:[#allocation2 + $0xa9] sm:$0xff]
    %v311 = vld [vmem:[#allocation2 + $0xb1] sm:$0xff]
    %v312 = vld [vmem:[#allocation2 + $0x2] sm:$0xff]
    %v313 = vld [vmem:[#allocation2 + $0xa] sm:$0xff]
    %v314 = vld [vmem:[#allocation2 + $0x1a] sm:$0xff]
    %v315 = vld [vmem:[#allocation2 + $0x22] sm:$0xff]
    %v316 = vld [vmem:[#allocation2 + $0x32] sm:$0xff]
    %v317 = vld [vmem:[#allocation2 + $0x3a] sm:$0xff]
    %v318 = vld [vmem:[#allocation2 + $0x4a] sm:$0xff]
    %v319 = vld [vmem:[#allocation2 + $0x52] sm:$0xff]
    %v320 = vld [vmem:[#allocation2 + $0x62] sm:$0xff]
    %v321 = vld [vmem:[#allocation2 + $0x6a] sm:$0xff]
    %v322 = vld [vmem:[#allocation2 + $0x7a] sm:$0xff]
    %v323 = vld [vmem:[#allocation2 + $0x82] sm:$0xff]
    %v324 = vld [vmem:[#allocation2 + $0x92] sm:$0xff]
    %v325 = vld [vmem:[#allocation2 + $0x9a] sm:$0xff]
    %v326 = vld [vmem:[#allocation2 + $0xaa] sm:$0xff]
    %v327 = vld [vmem:[#allocation2 + $0xb2] sm:$0xff]
    %v328 = vld [vmem:[#allocation2 + $0x3] sm:$0xff]
    %v329 = vld [vmem:[#allocation2 + $0xb] sm:$0xff]
    %v330 = vld [vmem:[#allocation2 + $0x1b] sm:$0xff]
    %v331 = vld [vmem:[#allocation2 + $0x23] sm:$0xff]
    %v332 = vld [vmem:[#allocation2 + $0x33] sm:$0xff]
    %v333 = vld [vmem:[#allocation2 + $0x3b] sm:$0xff]
    %v334 = vld [vmem:[#allocation2 + $0x4b] sm:$0xff]
    %v335 = vld [vmem:[#allocation2 + $0x53] sm:$0xff]
    %v336 = vld [vmem:[#allocation2 + $0x63] sm:$0xff]
    %v337 = vld [vmem:[#allocation2 + $0x6b] sm:$0xff]
    %v338 = vld [vmem:[#allocation2 + $0x7b] sm:$0xff]
    %v339 = vld [vmem:[#allocation2 + $0x83] sm:$0xff]
    %v340 = vld [vmem:[#allocation2 + $0x93] sm:$0xff]
    %v341 = vld [vmem:[#allocation2 + $0x9b] sm:$0xff]
    %v342 = vld [vmem:[#allocation2 + $0xab] sm:$0xff]
    %v343 = vld [vmem:[#allocation2 + $0xb3] sm:$0xff]
    %v344 = vld [vmem:[#allocation2 + $0x4] sm:$0xff]
    %v345 = vld [vmem:[#allocation2 + $0xc] sm:$0xff]
    %v346 = vld [vmem:[#allocation2 + $0x1c] sm:$0xff]
    %v347 = vld [vmem:[#allocation2 + $0x24] sm:$0xff]
    %v348 = vld [vmem:[#allocation2 + $0x34] sm:$0xff]
    %v349 = vld [vmem:[#allocation2 + $0x3c] sm:$0xff]
    %v350 = vld [vmem:[#allocation2 + $0x4c] sm:$0xff]
    %v351 = vld [vmem:[#allocation2 + $0x54] sm:$0xff]
    %v352 = vld [vmem:[#allocation2 + $0x64] sm:$0xff]
    %v353 = vld [vmem:[#allocation2 + $0x6c] sm:$0xff]
    %v354 = vld [vmem:[#allocation2 + $0x7c] sm:$0xff]
    %v355 = vld [vmem:[#allocation2 + $0x84] sm:$0xff]
    %v356 = vld [vmem:[#allocation2 + $0x94] sm:$0xff]
    %v357 = vld [vmem:[#allocation2 + $0x9c] sm:$0xff]
    %v358 = vld [vmem:[#allocation2 + $0xac] sm:$0xff]
    %v359 = vld [vmem:[#allocation2 + $0xb4] sm:$0xff]
    %376 = vrot.lane.b32.xlu0 %v296, 32
    %v377 = vpop.permute.xlu0 %376
    %378 = vrot.lane.b32.xlu0 %v297, 32
    %v379 = vpop.permute.xlu0 %378
    %380 = vrot.lane.b32.xlu0 %v298, 32
    %v381 = vpop.permute.xlu0 %380
    %382 = vrot.lane.b32.xlu0 %v299, 32
    %v383 = vpop.permute.xlu0 %382
    %384 = vrot.lane.b32.xlu0 %v300, 32
    %v385 = vpop.permute.xlu0 %384
    %386 = vrot.lane.b32.xlu0 %v301, 32
    %v387 = vpop.permute.xlu0 %386
    %388 = vrot.lane.b32.xlu0 %v302, 32
    %v389 = vpop.permute.xlu0 %388
    %390 = vrot.lane.b32.xlu0 %v303, 32
    %v391 = vpop.permute.xlu0 %390
    %392 = vrot.lane.b32.xlu0 %v304, 32
    %v393 = vpop.permute.xlu0 %392
    %394 = vrot.lane.b32.xlu0 %v305, 32
    %v395 = vpop.permute.xlu0 %394
    %396 = vrot.lane.b32.xlu0 %v306, 32
    %v397 = vpop.permute.xlu0 %396
    %398 = vrot.lane.b32.xlu0 %v307, 32
    %v399 = vpop.permute.xlu0 %398
    %400 = vrot.lane.b32.xlu0 %v308, 32
    %v401 = vpop.permute.xlu0 %400
    %402 = vrot.lane.b32.xlu0 %v309, 32
    %v403 = vpop.permute.xlu0 %402
    %404 = vrot.lane.b32.xlu0 %v310, 32
    %v405 = vpop.permute.xlu0 %404
    %406 = vrot.lane.b32.xlu0 %v311, 32
    %v407 = vpop.permute.xlu0 %406
    %440 = vrot.lane.b32.xlu0 %v312, 64
    %v441 = vpop.permute.xlu0 %440
    %442 = vrot.lane.b32.xlu0 %v313, 64
    %v443 = vpop.permute.xlu0 %442
    %444 = vrot.lane.b32.xlu0 %v314, 64
    %v445 = vpop.permute.xlu0 %444
    %446 = vrot.lane.b32.xlu0 %v315, 64
    %v447 = vpop.permute.xlu0 %446
    %448 = vrot.lane.b32.xlu0 %v316, 64
    %v449 = vpop.permute.xlu0 %448
    %450 = vrot.lane.b32.xlu0 %v317, 64
    %v451 = vpop.permute.xlu0 %450
    %452 = vrot.lane.b32.xlu0 %v318, 64
    %v453 = vpop.permute.xlu0 %452
    %454 = vrot.lane.b32.xlu0 %v319, 64
    %v455 = vpop.permute.xlu0 %454
    %456 = vrot.lane.b32.xlu0 %v320, 64
    %v457 = vpop.permute.xlu0 %456
    %458 = vrot.lane.b32.xlu0 %v321, 64
    %v459 = vpop.permute.xlu0 %458
    %460 = vrot.lane.b32.xlu0 %v322, 64
    %v461 = vpop.permute.xlu0 %460
    %462 = vrot.lane.b32.xlu0 %v323, 64
    %v463 = vpop.permute.xlu0 %462
    %464 = vrot.lane.b32.xlu0 %v324, 64
    %v465 = vpop.permute.xlu0 %464
    %466 = vrot.lane.b32.xlu0 %v325, 64
    %v467 = vpop.permute.xlu0 %466
    %468 = vrot.lane.b32.xlu0 %v326, 64
    %v469 = vpop.permute.xlu0 %468
    %470 = vrot.lane.b32.xlu0 %v327, 64
    %v471 = vpop.permute.xlu0 %470
    %504 = vrot.lane.b32.xlu0 %v328, 96
    %v505 = vpop.permute.xlu0 %504
    %506 = vrot.lane.b32.xlu0 %v329, 96
    %v507 = vpop.permute.xlu0 %506
    %508 = vrot.lane.b32.xlu0 %v330, 96
    %v509 = vpop.permute.xlu0 %508
    %510 = vrot.lane.b32.xlu0 %v331, 96
    %v511 = vpop.permute.xlu0 %510
    %512 = vrot.lane.b32.xlu0 %v332, 96
    %v513 = vpop.permute.xlu0 %512
    %514 = vrot.lane.b32.xlu0 %v333, 96
    %v515 = vpop.permute.xlu0 %514
    %516 = vrot.lane.b32.xlu0 %v334, 96
    %v517 = vpop.permute.xlu0 %516
    %518 = vrot.lane.b32.xlu0 %v335, 96
    %v519 = vpop.permute.xlu0 %518
    %520 = vrot.lane.b32.xlu0 %v336, 96
    %v521 = vpop.permute.xlu0 %520
    %522 = vrot.lane.b32.xlu0 %v337, 96
    %v523 = vpop.permute.xlu0 %522
    %524 = vrot.lane.b32.xlu0 %v338, 96
    %v525 = vpop.permute.xlu0 %524
    %526 = vrot.lane.b32.xlu0 %v339, 96
    %v527 = vpop.permute.xlu0 %526
    %528 = vrot.lane.b32.xlu0 %v340, 96
    %v529 = vpop.permute.xlu0 %528
    %530 = vrot.lane.b32.xlu0 %v341, 96
    %v531 = vpop.permute.xlu0 %530
    %532 = vrot.lane.b32.xlu0 %v342, 96
    %v533 = vpop.permute.xlu0 %532
    %534 = vrot.lane.b32.xlu0 %v343, 96
    %v535 = vpop.permute.xlu0 %534
    %v552 = vsel %vm246, %v280, %v377
    %v553 = vsel %vm246, %v281, %v379
    %v554 = vsel %vm246, %v282, %v381
    %v555 = vsel %vm246, %v283, %v383
    %v556 = vsel %vm246, %v284, %v385
    %v557 = vsel %vm246, %v285, %v387
    %v558 = vsel %vm246, %v286, %v389
    %v559 = vsel %vm246, %v287, %v391
    %v560 = vsel %vm246, %v288, %v393
    %v561 = vsel %vm246, %v289, %v395
    %v562 = vsel %vm246, %v290, %v397
    %v563 = vsel %vm246, %v291, %v399
    %v564 = vsel %vm246, %v292, %v401
    %v565 = vsel %vm246, %v293, %v403
    %v566 = vsel %vm246, %v294, %v405
    %v567 = vsel %vm246, %v295, %v407
    %vm568 = vcmask 523264
    %v569 = vsel %vm568, %v552, %v441
    %v570 = vsel %vm568, %v553, %v443
    %v571 = vsel %vm568, %v554, %v445
    %v572 = vsel %vm568, %v555, %v447
    %v573 = vsel %vm568, %v556, %v449
    %v574 = vsel %vm568, %v557, %v451
    %v575 = vsel %vm568, %v558, %v453
    %v576 = vsel %vm568, %v559, %v455
    %v577 = vsel %vm568, %v560, %v457
    %v578 = vsel %vm568, %v561, %v459
    %v579 = vsel %vm568, %v562, %v461
    %v580 = vsel %vm568, %v563, %v463
    %v581 = vsel %vm568, %v564, %v465
    %v582 = vsel %vm568, %v565, %v467
    %v583 = vsel %vm568, %v566, %v469
    %v584 = vsel %vm568, %v567, %v471
    %vm585 = vcmask 785408
    %v586 = vsel %vm585, %v569, %v505
    %v587 = vsel %vm585, %v570, %v507
    %v588 = vsel %vm585, %v571, %v509
    %v589 = vsel %vm585, %v572, %v511
    %v590 = vsel %vm585, %v573, %v513
    %v591 = vsel %vm585, %v574, %v515
    %v592 = vsel %vm585, %v575, %v517
    %v593 = vsel %vm585, %v576, %v519
    %v594 = vsel %vm585, %v577, %v521
    %v595 = vsel %vm585, %v578, %v523
    %v596 = vsel %vm585, %v579, %v525
    %v597 = vsel %vm585, %v580, %v527
    %v598 = vsel %vm585, %v581, %v529
    %v599 = vsel %vm585, %v582, %v531
    %v600 = vsel %vm585, %v583, %v533
    %v601 = vsel %vm585, %v584, %v535
    %v602 = vld [vmem:[%s2] sm:$0xff]
    %v603 = vld [vmem:[%s2 + $0x8] sm:$0xff]
    %v604 = vld [vmem:[%s2 + $0x10] sm:$0xff]
    %v605 = vld [vmem:[%s2 + $0x18] sm:$0xff]
    %v606 = vld [vmem:[%s2 + $0x20] sm:$0xff]
    %v607 = vld [vmem:[%s2 + $0x28] sm:$0xff]
    %v608 = vld [vmem:[%s2 + $0x30] sm:$0xff]
    %v609 = vld [vmem:[%s2 + $0x38] sm:$0xff]
    %v610 = vld [vmem:[%s2 + $0x40] sm:$0xff]
    %v611 = vld [vmem:[%s2 + $0x48] sm:$0xff]
    %v612 = vld [vmem:[%s2 + $0x50] sm:$0xff]
    %v613 = vld [vmem:[%s2 + $0x58] sm:$0xff]
    %v614 = vld [vmem:[%s2 + $0x60] sm:$0xff]
    %v615 = vld [vmem:[%s2 + $0x68] sm:$0xff]
    %v616 = vld [vmem:[%s2 + $0x70] sm:$0xff]
    %v617 = vld [vmem:[%s2 + $0x78] sm:$0xff]
    %v618 = vld [vmem:[%s2 + $0x80] sm:$0xff]
    %v619 = vld [vmem:[%s2 + $0x88] sm:$0xff]
    %v620 = vld [vmem:[%s2 + $0x90] sm:$0xff]
    %v621 = vld [vmem:[%s2 + $0x98] sm:$0xff]
    %v622 = vld [vmem:[%s3] sm:$0x1]
    %v624 = vlaneseq
    %v625 = vshrl.u32 %v624, 7
    %v626 = vsub.s32 0, %v625
    %v627 = vrot.slane %v622, %v626
    %v630 = vsel %vm246, %v344, 0
    %v633 = vsel %vm246, %v345, 0
    %v636 = vsel %vm246, %v346, 0
    %v639 = vsel %vm246, %v347, 0
    %v642 = vsel %vm246, %v348, 0
    %v645 = vsel %vm246, %v349, 0
    %v648 = vsel %vm246, %v350, 0
    %v651 = vsel %vm246, %v351, 0
    %v654 = vsel %vm246, %v352, 0
    %v657 = vsel %vm246, %v353, 0
    %v660 = vsel %vm246, %v354, 0
    %v663 = vsel %vm246, %v355, 0
    %v666 = vsel %vm246, %v356, 0
    %v669 = vsel %vm246, %v357, 0
    %v672 = vsel %vm246, %v358, 0
    %v675 = vsel %vm246, %v359, 0
    %677 = vmatprep.subr.mxu0 0.0
    %678 = vmatpush1.msra.mxu0 %v617
    %679 = vmatprep.subr.mxu0 0.0
    %680 = vmatpush1.msra.mxu0 %v616
    %681 = vmatprep.subr.mxu0 0.0
    %682 = vmatpush1.msra.mxu0 %v615
    %683 = vmatprep.subr.mxu0 0.0
    %684 = vmatpush1.msra.mxu0 %v614
    %685 = vmatprep.subr.mxu0 0.0
    %686 = vmatpush1.msra.mxu0 %v613
    %687 = vmatprep.subr.mxu0 0.0
    %688 = vmatpush1.msra.mxu0 %v612
    %689 = vmatprep.subr.mxu0 0.0
    %690 = vmatpush1.msra.mxu0 %v611
    %691 = vmatprep.subr.mxu0 0.0
    %692 = vmatpush1.msra.mxu0 %v610
    %693 = vmatprep.subr.mxu0 0.0
    %694 = vmatpush1.msra.mxu0 %v609
    %695 = vmatprep.subr.mxu0 0.0
    %696 = vmatpush1.msra.mxu0 %v608
    %697 = vmatprep.subr.mxu0 0.0
    %698 = vmatpush1.msra.mxu0 %v607
    %699 = vmatprep.subr.mxu0 0.0
    %700 = vmatpush1.msra.mxu0 %v606
    %701 = vmatprep.subr.mxu0 0.0
    %702 = vmatpush1.msra.mxu0 %v605
    %703 = vmatprep.subr.mxu0 0.0
    %704 = vmatpush1.msra.mxu0 %v604
    %705 = vmatprep.subr.mxu0 0.0
    %706 = vmatpush1.msra.mxu0 %v603
    %707 = vmatprep.subr.mxu0 0.0
    %708 = vmatpush1.msra.mxu0 %v602
    %709 = vmatprep.subr.mxu0 0.0
    %710 = vmatpush2.msra.mxu0 0.0
    %711 = vmatprep.subr.mxu0 0.0
    %712 = vmatpush2.msra.mxu0 0.0
    %713 = vmatprep.subr.mxu0 0.0
    %714 = vmatpush2.msra.mxu0 0.0
    %715 = vmatprep.subr.mxu0 0.0
    %716 = vmatpush2.msra.mxu0 0.0
    %717 = vmatprep.subr.mxu0 0.0
    %718 = vmatpush2.msra.mxu0 0.0
    %719 = vmatprep.subr.mxu0 0.0
    %720 = vmatpush2.msra.mxu0 0.0
    %721 = vmatprep.subr.mxu0 0.0
    %722 = vmatpush2.msra.mxu0 0.0
    %723 = vmatprep.subr.mxu0 0.0
    %724 = vmatpush2.msra.mxu0 0.0
    %725 = vmatprep.subr.mxu0 0.0
    %726 = vmatpush2.msra.mxu0 0.0
    %727 = vmatprep.subr.mxu0 0.0
    %728 = vmatpush2.msra.mxu0 0.0
    %729 = vmatprep.subr.mxu0 0.0
    %730 = vmatpush2.msra.mxu0 0.0
    %731 = vmatprep.subr.mxu0 0.0
    %732 = vmatpush2.msra.mxu0 0.0
    %733 = vmatprep.subr.mxu0 0.0
    %734 = vmatpush2.msra.mxu0 %v621
    %735 = vmatprep.subr.mxu0 0.0
    %736 = vmatpush2.msra.mxu0 %v620
    %737 = vmatprep.subr.mxu0 0.0
    %738 = vmatpush2.msra.mxu0 %v619
    %739 = vmatprep.subr.mxu0 0.0
    %740 = vmatpush2.msra.mxu0 %v618
    %741 = vmatprep.mubr.f32.mxu0 %v630
    %742 = vmatmul.mubr.f32.gmra.mxu0 %v586
    %v743 = vpop.f32.mrf.mxu0
    %v744 = vadd.f32 %v627, %v743
    %v745 = vpop.f32.mrf.mxu0
    %746 = vmatprep.mubr.f32.mxu0 %v633
    %747 = vmatmul.mubr.f32.gmra.mxu0 %v587
    %v748 = vpop.f32.mrf.mxu0
    %v749 = vadd.f32 %v627, %v748
    %v750 = vpop.f32.mrf.mxu0
    %751 = vmatprep.mubr.f32.mxu0 %v636
    %752 = vmatmul.mubr.f32.gmra.mxu0 %v588
    %v753 = vpop.f32.mrf.mxu0
    %v754 = vadd.f32 %v627, %v753
    %v755 = vpop.f32.mrf.mxu0
    %756 = vmatprep.mubr.f32.mxu0 %v639
    %757 = vmatmul.mubr.f32.gmra.mxu0 %v589
    %v758 = vpop.f32.mrf.mxu0
    %v759 = vadd.f32 %v627, %v758
    %v760 = vpop.f32.mrf.mxu0
    %761 = vmatprep.mubr.f32.mxu0 %v642
    %762 = vmatmul.mubr.f32.gmra.mxu0 %v590
    %v763 = vpop.f32.mrf.mxu0
    %v764 = vadd.f32 %v627, %v763
    %v765 = vpop.f32.mrf.mxu0
    %766 = vmatprep.mubr.f32.mxu0 %v645
    %767 = vmatmul.mubr.f32.gmra.mxu0 %v591
    %v768 = vpop.f32.mrf.mxu0
    %v769 = vadd.f32 %v627, %v768
    %v770 = vpop.f32.mrf.mxu0
    %771 = vmatprep.mubr.f32.mxu0 %v648
    %772 = vmatmul.mubr.f32.gmra.mxu0 %v592
    %v773 = vpop.f32.mrf.mxu0
    %v774 = vadd.f32 %v627, %v773
    %v775 = vpop.f32.mrf.mxu0
    %776 = vmatprep.mubr.f32.mxu0 %v651
    %777 = vmatmul.mubr.f32.gmra.mxu0 %v593
    %v778 = vpop.f32.mrf.mxu0
    %v779 = vadd.f32 %v627, %v778
    %v780 = vpop.f32.mrf.mxu0
    %781 = vmatprep.mubr.f32.mxu0 %v654
    %782 = vmatmul.mubr.f32.gmra.mxu0 %v594
    %v783 = vpop.f32.mrf.mxu0
    %v784 = vadd.f32 %v627, %v783
    %v785 = vpop.f32.mrf.mxu0
    %786 = vmatprep.mubr.f32.mxu0 %v657
    %787 = vmatmul.mubr.f32.gmra.mxu0 %v595
    %v788 = vpop.f32.mrf.mxu0
    %v789 = vadd.f32 %v627, %v788
    %v790 = vpop.f32.mrf.mxu0
    %791 = vmatprep.mubr.f32.mxu0 %v660
    %792 = vmatmul.mubr.f32.gmra.mxu0 %v596
    %v793 = vpop.f32.mrf.mxu0
    %v794 = vadd.f32 %v627, %v793
    %v795 = vpop.f32.mrf.mxu0
    %796 = vmatprep.mubr.f32.mxu0 %v663
    %797 = vmatmul.mubr.f32.gmra.mxu0 %v597
    %v798 = vpop.f32.mrf.mxu0
    %v799 = vadd.f32 %v627, %v798
    %v800 = vpop.f32.mrf.mxu0
    %801 = vmatprep.mubr.f32.mxu0 %v666
    %802 = vmatmul.mubr.f32.gmra.mxu0 %v598
    %v803 = vpop.f32.mrf.mxu0
    %v804 = vadd.f32 %v627, %v803
    %v805 = vpop.f32.mrf.mxu0
    %806 = vmatprep.mubr.f32.mxu0 %v669
    %807 = vmatmul.mubr.f32.gmra.mxu0 %v599
    %v808 = vpop.f32.mrf.mxu0
    %v809 = vadd.f32 %v627, %v808
    %v810 = vpop.f32.mrf.mxu0
    %811 = vmatprep.mubr.f32.mxu0 %v672
    %812 = vmatmul.mubr.f32.gmra.mxu0 %v600
    %v813 = vpop.f32.mrf.mxu0
    %v814 = vadd.f32 %v627, %v813
    %v815 = vpop.f32.mrf.mxu0
    %816 = vmatprep.mubr.f32.mxu0 %v675
    %817 = vmatmul.mubr.f32.gmra.mxu0 %v601
    %v818 = vpop.f32.mrf.mxu0
    %v819 = vadd.f32 %v627, %v818
    %v820 = vpop.f32.mrf.mxu0
    %821 = vdwg.mxu0
    %v822 = vmax.f32 %v744, 0.0
    %v823 = vmax.f32 %v749, 0.0
    %v824 = vmax.f32 %v754, 0.0
    %v825 = vmax.f32 %v759, 0.0
    %v826 = vmax.f32 %v764, 0.0
    %v827 = vmax.f32 %v769, 0.0
    %v828 = vmax.f32 %v774, 0.0
    %v829 = vmax.f32 %v779, 0.0
    %v830 = vmax.f32 %v784, 0.0
    %v831 = vmax.f32 %v789, 0.0
    %v832 = vmax.f32 %v794, 0.0
    %v833 = vmax.f32 %v799, 0.0
    %v834 = vmax.f32 %v804, 0.0
    %v835 = vmax.f32 %v809, 0.0
    %v836 = vmax.f32 %v814, 0.0
    %v837 = vmax.f32 %v819, 0.0
    %v838 = vld [vmem:[%s4] sm:$0x1]
    %v839 = vsub.s32 10, %v838
    %v840 = vlaneseq
    %v841 = vshrl.u32 %v840, 7
    %v842 = vadd.s32 %v841, 8
    %v843 = vlaneseq
    %v844 = vshrl.u32 %v843, 7
    %v845 = vsub.s32 0, %v844
    %v846 = vrot.slane %v839, %v845
    %vm847 = vcmp.lt.s32.totalorder %v841, %v846
    %vm848 = vcmp.lt.s32.totalorder %v842, %v846
    %v849 = vsel %vm847, 1, 0
    %v850 = vsel %vm848, 1, 0
    %vm851 = vcmp.eq.s32.totalorder %v849, 1
    %vm852 = vcmp.eq.s32.totalorder %v850, 1
    %v853 = vsel %vm851, %v822, 0.0
    %v854 = vsel %vm852, %v823, 0.0
    %v855 = vsel %vm851, %v824, 0.0
    %v856 = vsel %vm852, %v825, 0.0
    %v857 = vsel %vm851, %v826, 0.0
    %v858 = vsel %vm852, %v827, 0.0
    %v859 = vsel %vm851, %v828, 0.0
    %v860 = vsel %vm852, %v829, 0.0
    %v861 = vsel %vm851, %v830, 0.0
    %v862 = vsel %vm852, %v831, 0.0
    %v863 = vsel %vm851, %v832, 0.0
    %v864 = vsel %vm852, %v833, 0.0
    %v865 = vsel %vm851, %v834, 0.0
    %v866 = vsel %vm852, %v835, 0.0
    %v867 = vsel %vm851, %v836, 0.0
    %v868 = vsel %vm852, %v837, 0.0
    %v869 = vmax.f32 %v853, %v854
    %v870 = vrot.slane %v869, 4
    %v871 = vmax.f32 %v869, %v870
    %v872 = vrot.slane %v871, 2
    %v873 = vmax.f32 %v871, %v872
    %v874 = vrot.slane %v873, 1
    %v875 = vmax.f32 %v873, %v874
    %v876 = vmax.f32 %v855, %v856
    %v877 = vrot.slane %v876, 4
    %v878 = vmax.f32 %v876, %v877
    %v879 = vrot.slane %v878, 2
    %v880 = vmax.f32 %v878, %v879
    %v881 = vrot.slane %v880, 1
    %v882 = vmax.f32 %v880, %v881
    %v883 = vmax.f32 %v857, %v858
    %v884 = vrot.slane %v883, 4
    %v885 = vmax.f32 %v883, %v884
    %v886 = vrot.slane %v885, 2
    %v887 = vmax.f32 %v885, %v886
    %v888 = vrot.slane %v887, 1
    %v889 = vmax.f32 %v887, %v888
    %v890 = vmax.f32 %v859, %v860
    %v891 = vrot.slane %v890, 4
    %v892 = vmax.f32 %v890, %v891
    %v893 = vrot.slane %v892, 2
    %v894 = vmax.f32 %v892, %v893
    %v895 = vrot.slane %v894, 1
    %v896 = vmax.f32 %v894, %v895
    %v897 = vmax.f32 %v861, %v862
    %v898 = vrot.slane %v897, 4
    %v899 = vmax.f32 %v897, %v898
    %v900 = vrot.slane %v899, 2
    %v901 = vmax.f32 %v899, %v900
    %v902 = vrot.slane %v901, 1
    %v903 = vmax.f32 %v901, %v902
    %v904 = vmax.f32 %v863, %v864
    %v905 = vrot.slane %v904, 4
    %v906 = vmax.f32 %v904, %v905
    %v907 = vrot.slane %v906, 2
    %v908 = vmax.f32 %v906, %v907
    %v909 = vrot.slane %v908, 1
    %v910 = vmax.f32 %v908, %v909
    %v911 = vmax.f32 %v865, %v866
    %v912 = vrot.slane %v911, 4
    %v913 = vmax.f32 %v911, %v912
    %v914 = vrot.slane %v913, 2
    %v915 = vmax.f32 %v913, %v914
    %v916 = vrot.slane %v915, 1
    %v917 = vmax.f32 %v915, %v916
    %v918 = vmax.f32 %v867, %v868
    %v919 = vrot.slane %v918, 4
    %v920 = vmax.f32 %v918, %v919
    %v921 = vrot.slane %v920, 2
    %v922 = vmax.f32 %v920, %v921
    %v923 = vrot.slane %v922, 1
    %v924 = vmax.f32 %v922, %v923
    %v925 = vld [vmem:[#allocation3] sm:$0xff]
    %v926 = vld [vmem:[#allocation3 + $0x8] sm:$0xff]
    %v927 = vld [vmem:[#allocation3 + $0x10] sm:$0xff]
    %v928 = vld [vmem:[#allocation3 + $0x18] sm:$0xff]
    %v929 = vld [vmem:[#allocation3 + $0x20] sm:$0xff]
    %v930 = vld [vmem:[#allocation3 + $0x28] sm:$0xff]
    %v931 = vld [vmem:[#allocation3 + $0x30] sm:$0xff]
    %v932 = vld [vmem:[#allocation3 + $0x38] sm:$0xff]
    %v933 = vld [vmem:[#allocation3 + $0x40] sm:$0xff]
    %v934 = vld [vmem:[#allocation3 + $0x48] sm:$0xff]
    %v935 = vld [vmem:[#allocation3 + $0x50] sm:$0xff]
    %v936 = vld [vmem:[#allocation3 + $0x58] sm:$0xff]
    %v937 = vld [vmem:[#allocation3 + $0x60] sm:$0xff]
    %v938 = vld [vmem:[#allocation3 + $0x68] sm:$0xff]
    %v939 = vld [vmem:[#allocation3 + $0x70] sm:$0xff]
    %v940 = vld [vmem:[#allocation3 + $0x78] sm:$0xff]
    %v941 = vld [vmem:[%s6] sm:$0x1]
    %v943 = vlaneseq
    %v944 = vshrl.u32 %v943, 7
    %v945 = vsub.s32 0, %v944
    %v946 = vrot.slane %v941, %v945
    %vm956 = vcmask 1041409
    %v957 = vsel %vm956, %v882, %v875
    %vm958 = vcmask 1042434
    %v959 = vsel %vm958, %v889, %v957
    %vm960 = vcmask 1043459
    %v961 = vsel %vm960, %v896, %v959
    %vm962 = vcmask 1044484
    %v963 = vsel %vm962, %v903, %v961
    %vm964 = vcmask 1045509
    %v965 = vsel %vm964, %v910, %v963
    %vm966 = vcmask 1046534
    %v967 = vsel %vm966, %v917, %v965
    %vm968 = vcmask 1047559
    %v969 = vsel %vm968, %v924, %v967
    %971 = vmatprep.subr.mxu0 0.0
    %972 = vmatpush1.msra.mxu0 %v940
    %973 = vmatprep.subr.mxu0 0.0
    %974 = vmatpush1.msra.mxu0 %v939
    %975 = vmatprep.subr.mxu0 0.0
    %976 = vmatpush1.msra.mxu0 %v938
    %977 = vmatprep.subr.mxu0 0.0
    %978 = vmatpush1.msra.mxu0 %v937
    %979 = vmatprep.subr.mxu0 0.0
    %980 = vmatpush1.msra.mxu0 %v936
    %981 = vmatprep.subr.mxu0 0.0
    %982 = vmatpush1.msra.mxu0 %v935
    %983 = vmatprep.subr.mxu0 0.0
    %984 = vmatpush1.msra.mxu0 %v934
    %985 = vmatprep.subr.mxu0 0.0
    %986 = vmatpush1.msra.mxu0 %v933
    %987 = vmatprep.subr.mxu0 0.0
    %988 = vmatpush1.msra.mxu0 %v932
    %989 = vmatprep.subr.mxu0 0.0
    %990 = vmatpush1.msra.mxu0 %v931
    %991 = vmatprep.subr.mxu0 0.0
    %992 = vmatpush1.msra.mxu0 %v930
    %993 = vmatprep.subr.mxu0 0.0
    %994 = vmatpush1.msra.mxu0 %v929
    %995 = vmatprep.subr.mxu0 0.0
    %996 = vmatpush1.msra.mxu0 %v928
    %997 = vmatprep.subr.mxu0 0.0
    %998 = vmatpush1.msra.mxu0 %v927
    %999 = vmatprep.subr.mxu0 0.0
    %1000 = vmatpush1.msra.mxu0 %v926
    %1001 = vmatprep.subr.mxu0 0.0
    %1002 = vmatpush1.msra.mxu0 %v925
    %1003 = vmatprep.subr.mxu0 0.0
    %1004 = vmatpush2.msra.mxu0 0.0
    %1005 = vmatprep.subr.mxu0 0.0
    %1006 = vmatpush2.msra.mxu0 0.0
    %1007 = vmatprep.subr.mxu0 0.0
    %1008 = vmatpush2.msra.mxu0 0.0
    %1009 = vmatprep.subr.mxu0 0.0
    %1010 = vmatpush2.msra.mxu0 0.0
    %1011 = vmatprep.subr.mxu0 0.0
    %1012 = vmatpush2.msra.mxu0 0.0
    %1013 = vmatprep.subr.mxu0 0.0
    %1014 = vmatpush2.msra.mxu0 0.0
    %1015 = vmatprep.subr.mxu0 0.0
    %1016 = vmatpush2.msra.mxu0 0.0
    %1017 = vmatprep.subr.mxu0 0.0
    %1018 = vmatpush2.msra.mxu0 0.0
    %1019 = vmatprep.subr.mxu0 0.0
    %1020 = vmatpush2.msra.mxu0 0.0
    %1021 = vmatprep.subr.mxu0 0.0
    %1022 = vmatpush2.msra.mxu0 0.0
    %1023 = vmatprep.subr.mxu0 0.0
    %1024 = vmatpush2.msra.mxu0 0.0
    %1025 = vmatprep.subr.mxu0 0.0
    %1026 = vmatpush2.msra.mxu0 0.0
    %1027 = vmatprep.subr.mxu0 0.0
    %1028 = vmatpush2.msra.mxu0 0.0
    %1029 = vmatprep.subr.mxu0 0.0
    %1030 = vmatpush2.msra.mxu0 0.0
    %1031 = vmatprep.subr.mxu0 0.0
    %1032 = vmatpush2.msra.mxu0 0.0
    %1033 = vmatprep.subr.mxu0 0.0
    %1034 = vmatpush2.msra.mxu0 0.0
    %1035 = vmatprep.mubr.f32.mxu0 0.0
    %1036 = vmatmul.mubr.f32.gmra.mxu0 %v969
    %v1037 = vpop.f32.mrf.mxu0
    %v1038 = vadd.f32 %v946, %v1037
    %v1039 = vpop.f32.mrf.mxu0
    %1040 = vdwg.mxu0
    %1041 = vst [vmem:[#allocation6] sm:$0xff] %v1038
    // Predicated region
    $region34: #{tpu_custom_call.1} parent=1 // pred_check
      _
    $region35: #{tpu_custom_call.1} parent=1 // pred_check_branch
      %1043 = sbr.rel (0) target = $region37
    $region36: #{tpu_custom_call.1} parent=1 // pred_region
      %s1045 = ssub.s32 128, 128
      %1046 = vsyncadd [#allocation5], %s1045
      %s1048 = sshll.u32 [#allocation6], 4
      %s1049 = int_to_ptr.vmem [resolvable:$true] %s1048
      %1051 = dma.vmem_to_hbm [thread:$0]  %s1049, 128, %s7, [#allocation5]
    $region37: #{tpu_custom_call.1} parent=1 // pred_fallthru
      _
    // Predicated region
    $region38: #{tpu_custom_call.1} parent=1 // pred_check
      _
    $region39: #{tpu_custom_call.1} parent=1 // pred_check_branch
      %1053 = sbr.rel (0) target = $region41
    $region40: #{tpu_custom_call.1} parent=1 // pred_region
      %1054 = dma.done [#allocation5], 128
    $region41: #{tpu_custom_call.1} parent=1 // pred_fallthru
      _
    %1055 = vsyncpa [#allocation4], 1
    %1056 = vsyncpa [#allocation5], 1

</llo_original>
